<compile_context>
chip_gen: v6e
topology: v6e:2x2x1
jax: 0.10.0
libtpu: 0.0.40
codegen_flags: <defaults>
</compile_context>

<pallas_src>
import jax
import jax.numpy as jnp
from jax.experimental import pallas as pl
from jax.experimental.pallas import tpu as pltpu


_DEFAULT_VMEM_LIMIT = 32 * 1024 * 1024
_VMEM_LIMIT_CACHE = {}


def _vmem_limit_bytes():
    """Generation-aware scoped-VMEM request (cached).

    ~96 MiB on 128-MiB-VMEM chips (v5e/v6e), ~48 MiB on v7x (64 MiB physical),
    conservative 32 MiB fallback if the hardware query is unavailable.
    """
    if "limit" not in _VMEM_LIMIT_CACHE:
        limit = _DEFAULT_VMEM_LIMIT
        try:
            cap = getattr(pltpu.get_tpu_info(), "vmem_capacity_bytes", None)
            if cap:
                limit = max(_DEFAULT_VMEM_LIMIT,
                            min(int(cap) * 3 // 4, 96 * 1024 * 1024))
        except Exception:
            pass
        _VMEM_LIMIT_CACHE["limit"] = limit
    return _VMEM_LIMIT_CACHE["limit"]


def _embed_kernel(tokens_ref, w_ref, extra_ref, out_ref):
    # tokens_ref: (1, tT, K)  w_ref: (K, tHd)  extra_ref: (tT, tHd)  out_ref: (1, tT, tHd)
    acc = jnp.dot(tokens_ref[0], w_ref[...], preferred_element_type=jnp.float32)
    out_ref[0] = (acc + extra_ref[...]).astype(out_ref.dtype)


def _pick_hd_tile(K, Hd, w_sz, budget):
    """Output-N tile: full Hd when the single-buffered (K, Hd) weight fits in
    ~1/3 of the VMEM budget, else the largest multiple of 128 that does
    (keeps output stores lane-dense)."""
    if Hd <= 128 or K * Hd * w_sz <= budget // 3:
        return Hd
    max_thd = max(128, (budget // (3 * K * w_sz)) // 128 * 128)
    if max_thd >= Hd:
        return Hd
    for cand in range(max_thd, 127, -128):
        if Hd % cand == 0:
            return cand
    return 128  # ragged last Hd tile (masked); rare


def _pick_token_tile(T, K, tHd, sizes, max_rows, budget, min_tiles=1):
    """Token-tile height: dtype-aware sublane multiple, VMEM-budgeted, and at
    least `min_tiles` grid steps along the token axis (keeps both v7x
    TensorCores busy for single-image inference)."""
    tok_sz, w_sz, ext_sz, out_sz = sizes
    sub = max(8, 32 // min(tok_sz, ext_sz, out_sz))  # 8 f32 / 16 bf16 / 32 int8

    def footprint(rows):
        # double-buffered tokens / extra / out tiles + single-buffered weight
        # + in-kernel f32 temporaries (dot accumulator + sum).
        return (2 * rows * K * tok_sz
                + 2 * rows * tHd * (ext_sz + out_sz)
                + K * tHd * w_sz
                + 2 * rows * tHd * 4)

    cap = max(sub, (max_rows // sub) * sub)
    if min_tiles > 1 and T > sub:
        split = ((-(-T // min_tiles) + sub - 1) // sub) * sub
        cap = min(cap, split)

    rows = cap
    while rows > sub and footprint(rows) > budget:
        rows = max(sub, ((rows // 2) // sub) * sub)

    if T <= rows:
        return T  # full-extent block is always a legal block shape
    # Prefer an exact multiple-of-`sub` divisor so every tile is full.
    for cand in range(rows, sub - 1, -sub):
        if T % cand == 0:
            return cand
    # No exact divisor: balance tile sizes; Pallas masks the ragged last tile.
    n = -(-T // rows)
    return min(rows, ((-(-T // n) + sub - 1) // sub) * sub)


def fused_token_projection(tokens, w2d, extra, *, max_row_tile=1024, out_dtype=None):
    """out[b, t, :] = tokens[b, t, :] @ w2d + extra[t, :], fused on-chip."""
    B, T, K = tokens.shape
    K2, Hd = w2d.shape
    assert K == K2 and extra.shape == (T, Hd)
    out_dtype = w2d.dtype if out_dtype is None else jnp.dtype(out_dtype)

    vmem_limit = _vmem_limit_bytes()
    budget = int(vmem_limit * 0.75)
    sizes = (tokens.dtype.itemsize, w2d.dtype.itemsize,
             extra.dtype.itemsize, jnp.dtype(out_dtype).itemsize)

    tHd = _pick_hd_tile(K, Hd, w2d.dtype.itemsize, budget)
    num_hd = -(-Hd // tHd)

    # With B == 1 and a single Hd tile, force >= 2 token tiles so both v7x
    # TensorCores get a grid point.
    min_tiles = 2 if (B == 1 and num_hd == 1) else 1
    tT = _pick_token_tile(T, K, tHd, sizes, max_row_tile, budget, min_tiles)
    num_t = -(-T // tT)

    return pl.pallas_call(
        _embed_kernel,
        out_shape=jax.ShapeDtypeStruct((B, T, Hd), out_dtype),
        grid_spec=pltpu.PrefetchScalarGridSpec(
            num_scalar_prefetch=0,
            # Batch innermost: `extra` (and the weight) keep the same block
            # index across the inner loop, so their DMAs are skipped.
            grid=(num_hd, num_t, B),
            in_specs=[
                pl.BlockSpec((1, tT, K), lambda h, t, b: (b, t, 0)),
                # Fetched once per Hd tile; single-buffered (no second pipeline
                # buffer wasted on a block that is never prefetched-ahead).
                pl.BlockSpec((K, tHd), lambda h, t, b: (0, h),
                             pipeline_mode=pl.Buffered(1)),
                pl.BlockSpec((tT, tHd), lambda h, t, b: (t, h)),
            ],
            out_specs=pl.BlockSpec((1, tT, tHd), lambda h, t, b: (b, t, h)),
        ),
        compiler_params=pltpu.CompilerParams(
            dimension_semantics=("parallel", "parallel", "parallel"),
            vmem_limit_bytes=vmem_limit,
        ),
    )(tokens, w2d, extra)


def pixels_to_padded_tokens(pixel_values, patch_size, num_prefix_tokens):
    """NCHW -> (B, prefix + num_patches, C*P*P); prefix rows are zero.

    Per-patch K ordering is (c, p, q), matching PyTorch Conv2d weight
    flattening.  Zero prefix rows contribute nothing to the matmul; the
    cls/register token values come in through the `extra` operand."""
    B, C, H, W = pixel_values.shape
    P = patch_size
    Hp, Wp = H // P, W // P
    x = pixel_values.reshape(B, C, Hp, P, Wp, P)
    x = x.transpose(0, 2, 4, 1, 3, 5)  # (B, Hp, Wp, C, P, P)
    patches = x.reshape(B, Hp * Wp, C * P * P)
    return jnp.pad(patches, ((0, 0), (num_prefix_tokens, 0), (0, 0)))


def prepare_eomt_embedding_params(params):
    """One-time parameter prep (hoisted out of the per-forward hot path)."""
    hidden_size = params["proj_weight"].shape[0]
    # PyTorch conv weight (Hd, C, P, P) -> (K, Hd)
    w2d = jnp.transpose(params["proj_weight"].reshape(hidden_size, -1))
    # [cls ; register_tokens ; position_embeddings + conv_bias]  -> (T, Hd)
    extra = jnp.concatenate(
        [
            params["cls_token"][0],
            params["register_tokens"][0],
            params["position_embeddings"] + params["proj_bias"][None, :],
        ],
        axis=0,
    )
    return w2d, extra


def eomt_embeddings_forward(pixel_values, w2d, extra, *, patch_size,
                            max_row_tile=1024, compute_dtype=None):
    """Full EomtEmbeddings.forward semantics.

    pixel_values: (B, C, H, W) (NCHW, as in PyTorch)
    compute_dtype: optional MXU operand dtype (e.g. jnp.bfloat16 on v5e);
                   None keeps exact `pixel_values.to(weight.dtype)` semantics.
    returns: (B, 1 + num_register_tokens + num_patches, hidden_size)
    """
    B, C, H, W = pixel_values.shape
    num_patches = (H // patch_size) * (W // patch_size)
    num_prefix = extra.shape[0] - num_patches  # 1 + num_register_tokens
    target_dtype = w2d.dtype
    matmul_dtype = target_dtype if compute_dtype is None else compute_dtype
    tokens = pixels_to_padded_tokens(
        pixel_values.astype(matmul_dtype), patch_size, num_prefix
    )
    w_mm = w2d if matmul_dtype == target_dtype else w2d.astype(matmul_dtype)
    out = fused_token_projection(
        tokens, w_mm, extra, max_row_tile=max_row_tile, out_dtype=target_dtype
    )
    # dropout with hidden_dropout_prob = 0.0 -> identity (inference semantics)
    return out


def reference_forward(pixel_values, params, patch_size):
    """Pure-JAX reference (lax conv) for correctness checking."""
    x = pixel_values.astype(params["proj_weight"].dtype)
    conv = jax.lax.conv_general_dilated(
        x,
        params["proj_weight"],
        window_strides=(patch_size, patch_size),
        padding="VALID",
        dimension_numbers=("NCHW", "OIHW", "NCHW"),
    )
    B, Hd, Hp, Wp = conv.shape
    emb = conv.reshape(B, Hd, Hp * Wp).transpose(0, 2, 1)
    emb = emb + params["proj_bias"][None, None, :]
    emb = emb + params["position_embeddings"][None, :, :]
    cls = jnp.broadcast_to(params["cls_token"], (B, 1, Hd))
    reg = jnp.broadcast_to(
        params["register_tokens"], (B, params["register_tokens"].shape[1], Hd)
    )
    return jnp.concatenate([cls, reg, emb], axis=1)


if __name__ == "__main__":
    fwd = jax.jit(
        eomt_embeddings_forward,
        static_argnames=("patch_size", "max_row_tile", "compute_dtype"),
    )

    # ---------------- Test 1: small config-consistent shapes (f32) -------------
    batch = 2
    num_channels = 4
    image_size = 16
    patch_size = 4
    hidden_size = 32
    num_register_tokens = 4
    num_patches = (image_size // patch_size) ** 2  # 16
    initializer_range = 0.02

    key = jax.random.PRNGKey(0)
    k_px, k_cls, k_w, k_b, k_pos, k2 = jax.random.split(key, 6)

    pixel_values = jax.random.normal(
        k_px, (batch, num_channels, image_size, image_size), dtype=jnp.float32
    )
    params = {
        "cls_token": jax.random.normal(k_cls, (1, 1, hidden_size), dtype=jnp.float32),
        "register_tokens": jnp.zeros(
            (1, num_register_tokens, hidden_size), jnp.float32
        ),
        "proj_weight": initializer_range
        * jax.random.normal(
            k_w, (hidden_size, num_channels, patch_size, patch_size), dtype=jnp.float32
        ),
        "proj_bias": initializer_range
        * jax.random.normal(k_b, (hidden_size,), dtype=jnp.float32),
        "position_embeddings": initializer_range
        * jax.random.normal(k_pos, (num_patches, hidden_size), dtype=jnp.float32),
    }

    w2d, extra = prepare_eomt_embedding_params(params)
    out = jax.block_until_ready(fwd(pixel_values, w2d, extra, patch_size=patch_size))
    ref = reference_forward(pixel_values, params, patch_size)
    assert out.shape == (batch, 1 + num_register_tokens + num_patches, hidden_size)
    assert jnp.allclose(out, ref, atol=1e-4, rtol=1e-4)

    # ---------------- Test 1b: B=1 path (forced >=2 token tiles, masked ragged tile)
    out_b1 = jax.block_until_ready(
        fwd(pixel_values[:1], w2d, extra, patch_size=patch_size)
    )
    assert out_b1.shape == (1, 1 + num_register_tokens + num_patches, hidden_size)
    assert jnp.allclose(out_b1, ref[:1], atol=1e-4, rtol=1e-4)

    # ---------------- Test 2: multi-tile token pipeline (exact divisor path) ---
    c2, img2, p2, hid2, reg2 = 3, 32, 4, 64, 7  # T = 1 + 7 + 64 = 72, tile 24 -> 3 tiles
    np2 = (img2 // p2) ** 2
    ka, kb, kc, kd, ke, kf = jax.random.split(k2, 6)
    pixel_values2 = jax.random.normal(ka, (2, c2, img2, img2), dtype=jnp.float32)
    params2 = {
        "cls_token": jax.random.normal(kb, (1, 1, hid2), dtype=jnp.float32),
        "register_tokens": 0.02 * jax.random.normal(kc, (1, reg2, hid2), dtype=jnp.float32),
        "proj_weight": 0.02 * jax.random.normal(kd, (hid2, c2, p2, p2), dtype=jnp.float32),
        "proj_bias": 0.02 * jax.random.normal(ke, (hid2,), dtype=jnp.float32),
        "position_embeddings": 0.02 * jax.random.normal(kf, (np2, hid2), dtype=jnp.float32),
    }
    w2d2, extra2 = prepare_eomt_embedding_params(params2)
    out2 = jax.block_until_ready(
        fwd(pixel_values2, w2d2, extra2, patch_size=p2, max_row_tile=24)
    )
    ref2 = reference_forward(pixel_values2, params2, p2)
    assert out2.shape == (2, 1 + reg2 + np2, hid2)
    assert jnp.allclose(out2, ref2, atol=1e-4, rtol=1e-4)

    # ---------------- Test 3: bf16 parameter path (MXU-native, f32 accumulation)
    params_bf16 = jax.tree_util.tree_map(lambda a: a.astype(jnp.bfloat16), params)
    w2d_b, extra_b = prepare_eomt_embedding_params(params_bf16)
    out_b = jax.block_until_ready(
        fwd(pixel_values, w2d_b, extra_b, patch_size=patch_size)
    )
    assert out_b.dtype == jnp.bfloat16
    assert float(jnp.max(jnp.abs(out_b.astype(jnp.float32) - ref))) < 0.1

    print("KERNEL_OK")
</pallas_src>

<mosaic_0001>
module attributes {stable_mosaic.version = 11 : i64} {
  func.func @_embed_kernel(%arg0: i32, %arg1: i32, %arg2: i32, %arg3: memref<1x21x64xf32, #tpu.memory_space<vmem>>, %arg4: memref<64x32xf32, #tpu.memory_space<vmem>>, %arg5: memref<21x32xf32, #tpu.memory_space<vmem>>, %arg6: memref<1x21x32xf32, #tpu.memory_space<vmem>>) attributes {dimension_semantics = [#tpu.dimension_semantics<parallel>, #tpu.dimension_semantics<parallel>, #tpu.dimension_semantics<parallel>], iteration_bounds = array<i64: 1, 1, 2>, scalar_prefetch = 0 : i64, scratch_operands = 0 : i64, tpu.core_type = #tpu.core_type<tc>, window_params = [{transform_indices = @transform_0, window_bounds = array<i64: 1, 21, 64>}, {pipeline_mode = #tpu.pipeline_mode<synchronous>, transform_indices = @transform_1, window_bounds = array<i64: 64, 32>}, {transform_indices = @transform_2, window_bounds = array<i64: 21, 32>}, {transform_indices = @transform_3, window_bounds = array<i64: 1, 21, 32>}]} {
    %c0 = arith.constant 0 : index
    %c0_0 = arith.constant 0 : index
    %c0_1 = arith.constant 0 : index
    %0 = vector.load %arg3[%c0, %c0_0, %c0_1] : memref<1x21x64xf32, #tpu.memory_space<vmem>>, vector<1x21x64xf32>
    %1 = vector.shape_cast %0 : vector<1x21x64xf32> to vector<21x64xf32>
    %c0_2 = arith.constant 0 : index
    %c0_3 = arith.constant 0 : index
    %2 = vector.load %arg4[%c0_2, %c0_3] : memref<64x32xf32, #tpu.memory_space<vmem>>, vector<64x32xf32>
    %cst = arith.constant dense<0.000000e+00> : vector<21x32xf32>
    %3 = tpu.matmul %1, %2, %cst {dimension_numbers = #tpu.dot_dimension_numbers<[1], [0], [0], [1], [0, 0, 1, 1], [], []>} : vector<21x64xf32>, vector<64x32xf32>, vector<21x32xf32> -> vector<21x32xf32>
    %c0_4 = arith.constant 0 : index
    %c0_5 = arith.constant 0 : index
    %4 = vector.load %arg5[%c0_4, %c0_5] : memref<21x32xf32, #tpu.memory_space<vmem>>, vector<21x32xf32>
    %5 = arith.addf %3, %4 : vector<21x32xf32>
    %c0_6 = arith.constant 0 : index
    %c0_7 = arith.constant 0 : index
    %c0_8 = arith.constant 0 : index
    %6 = vector.load %arg6[%c0_6, %c0_7, %c0_8] : memref<1x21x32xf32, #tpu.memory_space<vmem>>, vector<1x21x32xf32>
    %7 = vector.shape_cast %6 : vector<1x21x32xf32> to vector<21x32xf32>
    %8 = vector.shape_cast %5 : vector<21x32xf32> to vector<1x21x32xf32>
    tpu.vector_store %arg6[%c0_6, %c0_7, %c0_8], %8 {strides = array<i32>} : memref<1x21x32xf32, #tpu.memory_space<vmem>>, vector<1x21x32xf32>,
    return
  }
  func.func @transform_0(%arg0: i32, %arg1: i32, %arg2: i32) -> (i32, i32, i32) {
    %c0_i32 = arith.constant 0 : i32
    %c0_i32_0 = arith.constant 0 : i32
    return %arg2, %arg1, %c0_i32 : i32, i32, i32
  }
  func.func @transform_1(%arg0: i32, %arg1: i32, %arg2: i32) -> (i32, i32) {
    %c0_i32 = arith.constant 0 : i32
    %c0_i32_0 = arith.constant 0 : i32
    return %c0_i32, %arg0 : i32, i32
  }
  func.func @transform_2(%arg0: i32, %arg1: i32, %arg2: i32) -> (i32, i32) {
    %c0_i32 = arith.constant 0 : i32
    return %arg1, %arg0 : i32, i32
  }
  func.func @transform_3(%arg0: i32, %arg1: i32, %arg2: i32) -> (i32, i32, i32) {
    %c0_i32 = arith.constant 0 : i32
    return %arg2, %arg1, %arg0 : i32, i32, i32
  }
}

</mosaic_0001>

<llo_original>
// kernel: eomt_embeddings_forward.1
$region0: #{eomt_embeddings_forward.1}
  #allocation0 [shape = 'u32[]', space=smem, size = 0x4, offset = 0x4, fixed_abs, tag = 'smem constant byte address 0x4 - core index']
  #allocation1 [shape = 'u32[144,128]{1,0:T(1,128)}', space=vmem, size = 0x12000, scoped, tag = 'internal scratch']
  %s0 = inlined_call_operand.vmem [shape: f32[2,21,64], index: 0, kind: input, shape index: {}]
  %s1 = inlined_call_operand.vmem [shape: f32[64,32], index: 1, kind: input, shape index: {}]
  %s2 = inlined_call_operand.vmem [shape: f32[21,32], index: 2, kind: input, shape index: {}]
  %s3 = inlined_call_operand.vmem [shape: f32[2,21,32], index: 3, kind: output, shape index: {}]
  %s4 = sld [smem:[#allocation0]]
  $region45: #{eomt_embeddings_forward.1} parent=0
    _
  %s6 = ssub.s32 1, %s4
  %s7 = scalar_select 0, %s6, %s4
  loop: start=0, step=1, limit=4
  $region2: #{eomt_embeddings_forward.1} parent=0 // loop_pre_header
    _
  $region3: #{eomt_embeddings_forward.1} parent=0 // loop_header
    %s9 = sphi 0, %s13
    %p10 = scmp.ge.s32.totalorder %s9, 4
    %s16 = sphi 0, %s35
    %s17 = sphi 0, %s31
    %s18 = sphi 0, %s27
    %s19 = sphi 0, %s16
    %s20 = sphi 0, %s17
    %s21 = sphi 0, %s18
    %s22 = sphi 0, %s19
    %s23 = sphi 0, %s20
    %s24 = sphi 0, %s21
    %s40 = sphi 0, %s42
    %s43 = sphi 0, %s40
    %s44 = sphi 0, %s43
    %s60 = sphi 0, %s44
    %s66 = sphi 0, %s68
    %s69 = sphi 0, %s66
    %s70 = sphi 0, %s69
    %s86 = sphi 0, %s70
    %s94 = sphi 0, %s96
    %s97 = sphi 0, %s94
    %s98 = sphi 0, %s97
    %s114 = sphi 0, %s98
    %s124 = sphi 0, %s126
    %s127 = sphi 0, %s124
    %s128 = sphi 0, %s127
    %s144 = sphi 0, %s128
  $region4: #{eomt_embeddings_forward.1} parent=0 // loop_header_branch
    %12 = sbr.rel (%p10) target = $region8
  $region5: #{eomt_embeddings_forward.1} parent=0 // loop_body
    %s14 = ssub.s32 %s9, 1
    %s15 = ssub.s32 %s9, 2
    %s25 = sadd.s32 1, %s18
    %p26 = scmp.ge.s32.totalorder %s25, 2
    %s27 = scalar_select %p26, 0, %s25
    %s28 = sadd.s32 1, %s17
    %s29 = scalar_select %p26, %s28, %s17
    %p30 = scmp.ge.s32.totalorder %s29, 1
    %s31 = scalar_select %p30, 0, %s29
    %s32 = sadd.s32 1, %s16
    %s33 = scalar_select %p30, %s32, %s16
    %p34 = scmp.ge.s32.totalorder %s33, 1
    %s35 = scalar_select %p34, 0, %s33
    %s36 = ssub.s32 %s18, %s27
    %s37 = ssub.s32 %s17, %s31
    %s38 = sor.u32 %s36, %s37
    %p39 = scmp.eq.s32.totalorder %s38, 0
    %s41 = sadd.s32 %s40, 1
    %s42 = scalar_select %p39, %s40, %s41
    %p45 = pneg %p39
    %p46 = scmp.eq.s32.totalorder %s9, 1
    %p47 = por %p45, %p46
    %p48 = scmp.ne.s32.totalorder %s40, %s43
    %p49 = scmp.eq.s32.totalorder %s9, 0
    %p50 = por %p48, %p49
    %p51 = scmp.ne.s32.totalorder %s40, %s43
    %p52 = scmp.eq.s32.totalorder %s14, 1
    %p53 = por %p51, %p52
    %p54 = scmp.ne.s32.totalorder %s43, %s44
    %p55 = scmp.eq.s32.totalorder %s14, 0
    %p56 = por %p54, %p55
    %p57 = scmp.ne.s32.totalorder %s43, %s44
    %p58 = scmp.eq.s32.totalorder %s15, 1
    %p59 = por %p57, %p58
    %p61 = scmp.ne.s32.totalorder %s44, %s60
    %p62 = scmp.eq.s32.totalorder %s15, 0
    %p63 = por %p61, %p62
    %s64 = ssub.s32 %s16, %s35
    %p65 = scmp.eq.s32.totalorder %s64, 0
    %s67 = sadd.s32 %s66, 1
    %s68 = scalar_select %p65, %s66, %s67
    %p71 = pneg %p65
    %p72 = scmp.eq.s32.totalorder %s9, 1
    %p73 = por %p71, %p72
    %p74 = scmp.ne.s32.totalorder %s66, %s69
    %p75 = scmp.eq.s32.totalorder %s9, 0
    %p76 = por %p74, %p75
    %p77 = scmp.ne.s32.totalorder %s66, %s69
    %p78 = scmp.eq.s32.totalorder %s14, 1
    %p79 = por %p77, %p78
    %p80 = scmp.ne.s32.totalorder %s69, %s70
    %p81 = scmp.eq.s32.totalorder %s14, 0
    %p82 = por %p80, %p81
    %p83 = scmp.ne.s32.totalorder %s69, %s70
    %p84 = scmp.eq.s32.totalorder %s15, 1
    %p85 = por %p83, %p84
    %p87 = scmp.ne.s32.totalorder %s70, %s86
    %p88 = scmp.eq.s32.totalorder %s15, 0
    %p89 = por %p87, %p88
    %s90 = ssub.s32 %s17, %s31
    %s91 = ssub.s32 %s16, %s35
    %s92 = sor.u32 %s90, %s91
    %p93 = scmp.eq.s32.totalorder %s92, 0
    %s95 = sadd.s32 %s94, 1
    %s96 = scalar_select %p93, %s94, %s95
    %p99 = pneg %p93
    %p100 = scmp.eq.s32.totalorder %s9, 1
    %p101 = por %p99, %p100
    %p102 = scmp.ne.s32.totalorder %s94, %s97
    %p103 = scmp.eq.s32.totalorder %s9, 0
    %p104 = por %p102, %p103
    %p105 = scmp.ne.s32.totalorder %s94, %s97
    %p106 = scmp.eq.s32.totalorder %s14, 1
    %p107 = por %p105, %p106
    %p108 = scmp.ne.s32.totalorder %s97, %s98
    %p109 = scmp.eq.s32.totalorder %s14, 0
    %p110 = por %p108, %p109
    %p111 = scmp.ne.s32.totalorder %s97, %s98
    %p112 = scmp.eq.s32.totalorder %s15, 1
    %p113 = por %p111, %p112
    %p115 = scmp.ne.s32.totalorder %s98, %s114
    %p116 = scmp.eq.s32.totalorder %s15, 0
    %p117 = por %p115, %p116
    %s118 = ssub.s32 %s18, %s27
    %s119 = ssub.s32 %s17, %s31
    %s120 = sor.u32 %s118, %s119
    %s121 = ssub.s32 %s16, %s35
    %s122 = sor.u32 %s120, %s121
    %p123 = scmp.eq.s32.totalorder %s122, 0
    %s125 = sadd.s32 %s124, 1
    %s126 = scalar_select %p123, %s124, %s125
    %p129 = pneg %p123
    %p130 = scmp.eq.s32.totalorder %s9, 1
    %p131 = por %p129, %p130
    %p132 = scmp.ne.s32.totalorder %s124, %s127
    %p133 = scmp.eq.s32.totalorder %s9, 0
    %p134 = por %p132, %p133
    %p135 = scmp.ne.s32.totalorder %s124, %s127
    %p136 = scmp.eq.s32.totalorder %s14, 1
    %p137 = por %p135, %p136
    %p138 = scmp.ne.s32.totalorder %s127, %s128
    %p139 = scmp.eq.s32.totalorder %s14, 0
    %p140 = por %p138, %p139
    %p141 = scmp.ne.s32.totalorder %s127, %s128
    %p142 = scmp.eq.s32.totalorder %s15, 1
    %p143 = por %p141, %p142
    %p145 = scmp.ne.s32.totalorder %s128, %s144
    %p146 = scmp.eq.s32.totalorder %s15, 0
    %p147 = por %p145, %p146
    %p148 = scmp.le.s32.totalorder 1, %s9
    %p149 = scmp.lt.s32.totalorder %s9, 3
    %p150 = pnand %p148, %p149
    %p151 = pneg %p150
    // Predicated region
    $region9: #{eomt_embeddings_forward.1} parent=5 // pred_check
      _
    $region10: #{eomt_embeddings_forward.1} parent=5 // pred_check_branch
      %153 = sbr.rel (%p150) target = $region12
    $region11: #{eomt_embeddings_forward.1} parent=5 // pred_region
      %s154 = ssub.s32 %s9, 1
      // Predicated region
      $region13: #{eomt_embeddings_forward.1} parent=11 // pred_check
        %p155 = pneg %p82
      $region14: #{eomt_embeddings_forward.1} parent=11 // pred_check_branch
        %157 = sbr.rel (%p155) target = $region16
      $region15: #{eomt_embeddings_forward.1} parent=11 // pred_region
        %p158 = scmp.lt.s32.totalorder %s19, 0
        %s159 = scalar_select %p158, %s19, 0
        %s160 = smul.addr %s159, 8
        %s161 = scalar_lea.vmem %s1, %s160
      $region16: #{eomt_embeddings_forward.1} parent=11 // pred_fallthru
        _
      // Predicated region
      $region17: #{eomt_embeddings_forward.1} parent=11 // pred_check
        %p162 = pneg %p110
      $region18: #{eomt_embeddings_forward.1} parent=11 // pred_check_branch
        %164 = sbr.rel (%p162) target = $region20
      $region19: #{eomt_embeddings_forward.1} parent=11 // pred_region
        %s165 = smul.u32 3, %s20
        %p166 = scmp.lt.s32.totalorder %s165, 2
        %s167 = scalar_select %p166, %s165, 2
        %p168 = scmp.lt.s32.totalorder %s19, 0
        %s169 = scalar_select %p168, %s19, 0
        %s170 = sadd.s32 %s169, %s167
        %s171 = smul.addr %s170, 8
        %s172 = scalar_lea.vmem %s2, %s171
        %s173 = smul.u32 3, %s20
      $region20: #{eomt_embeddings_forward.1} parent=11 // pred_fallthru
        _
    $region12: #{eomt_embeddings_forward.1} parent=5 // pred_fallthru
      _
    %p174 = scmp.lt.s32.totalorder %s9, 2
    // Predicated region
    $region21: #{eomt_embeddings_forward.1} parent=5 // pred_check
      %p175 = pneg %p174
    $region22: #{eomt_embeddings_forward.1} parent=5 // pred_check_branch
      %177 = sbr.rel (%p175) target = $region24
    $region23: #{eomt_embeddings_forward.1} parent=5 // pred_region
      // Predicated region
      $region25: #{eomt_embeddings_forward.1} parent=23 // pred_check
        %p178 = pneg %p50
      $region26: #{eomt_embeddings_forward.1} parent=23 // pred_check_branch
        %180 = sbr.rel (%p178) target = $region28
      $region27: #{eomt_embeddings_forward.1} parent=23 // pred_region
        %s181 = smul.u32 3, %s17
        %p182 = scmp.lt.s32.totalorder %s18, 1
        %s183 = scalar_select %p182, %s18, 1
        %p184 = scmp.lt.s32.totalorder %s181, 2
        %s185 = scalar_select %p184, %s181, 2
        %s186 = smul.addr %s183, 3
        %s187 = sadd.s32 %s185, %s186
        %s188 = smul.addr %s187, 8
        %s189 = scalar_lea.vmem %s0, %s188
        %s190 = smul.u32 3, %s17
      $region28: #{eomt_embeddings_forward.1} parent=23 // pred_fallthru
        _
    $region24: #{eomt_embeddings_forward.1} parent=5 // pred_fallthru
      _
    %p191 = scmp.le.s32.totalorder 1, %s9
    %p192 = scmp.lt.s32.totalorder %s9, 3
    %p193 = pnand %p191, %p192
    %p194 = pneg %p193
    // Predicated region
    $region29: #{eomt_embeddings_forward.1} parent=5 // pred_check
      _
    $region30: #{eomt_embeddings_forward.1} parent=5 // pred_check_branch
      %196 = sbr.rel (%p193) target = $region32
    $region31: #{eomt_embeddings_forward.1} parent=5 // pred_region
      %s197 = ssub.s32 %s9, 1
      %s198 = smul.u32 3, %s20
      %p199 = scmp.lt.s32.totalorder %s21, 1
      %s200 = scalar_select %p199, %s21, 1
      %p201 = scmp.lt.s32.totalorder %s198, 2
      %s202 = scalar_select %p201, %s198, 2
      %s203 = smul.addr %s200, 3
      %s204 = sadd.s32 %s202, %s203
      %s205 = smul.addr %s204, 8
      %s206 = scalar_lea.vmem %s0, %s205
      %p207 = pneg %p56
      %p208 = pneg %p53
      %p209 = scmp.lt.s32.totalorder %s19, 0
      %s210 = scalar_select %p209, %s19, 0
      %s211 = smul.addr %s210, 8
      %s212 = scalar_lea.vmem %s1, %s211
      %p213 = pneg %p82
      %p214 = pneg %p79
      %s215 = smul.u32 3, %s20
      %p216 = scmp.lt.s32.totalorder %s215, 2
      %s217 = scalar_select %p216, %s215, 2
      %p218 = scmp.lt.s32.totalorder %s19, 0
      %s219 = scalar_select %p218, %s19, 0
      %s220 = sadd.s32 %s219, %s217
      %s221 = smul.addr %s220, 8
      %s222 = scalar_lea.vmem %s2, %s221
      %p223 = pneg %p110
      %p224 = pneg %p107
      %p225 = pneg %p140
      %p226 = pneg %p137
      %s227 = smul.u32 3, %s20
      %p228 = scmp.lt.s32.totalorder %s21, 1
      %s229 = scalar_select %p228, %s21, 1
      %p230 = scmp.lt.s32.totalorder %s227, 2
      %s231 = scalar_select %p230, %s227, 2
      %p232 = scmp.lt.s32.totalorder %s19, 0
      %s233 = scalar_select %p232, %s19, 0
      %s234 = sadd.s32 %s233, %s231
      %s235 = smul.addr %s229, 3
      %s236 = sadd.s32 %s234, %s235
      %s237 = smul.addr %s236, 8
      %s238 = scalar_lea.vmem %s3, %s237
      %s239 = smul.u32 3, %s20
      %p240 = scmp.lt.s32.totalorder %s21, 1
      %s241 = scalar_select %p240, %s21, 1
      %p242 = scmp.lt.s32.totalorder %s239, 2
      %s243 = scalar_select %p242, %s239, 2
      %s244 = smul.addr %s241, 3
      %s245 = sadd.s32 %s243, %s244
      %s246 = smul.addr %s245, 8
      %s247 = scalar_lea.vmem %s0, %s246
      %s248 = smul.u32 3, %s20
      %p249 = scmp.lt.s32.totalorder %s19, 0
      %s250 = scalar_select %p249, %s19, 0
      %s251 = smul.addr %s250, 8
      %s252 = scalar_lea.vmem %s1, %s251
      %s253 = smul.u32 3, %s20
      %p254 = scmp.lt.s32.totalorder %s253, 2
      %s255 = scalar_select %p254, %s253, 2
      %p256 = scmp.lt.s32.totalorder %s19, 0
      %s257 = scalar_select %p256, %s19, 0
      %s258 = sadd.s32 %s257, %s255
      %s259 = smul.addr %s258, 8
      %s260 = scalar_lea.vmem %s2, %s259
      %s261 = smul.u32 3, %s20
      %s262 = smul.u32 3, %s20
      %p263 = scmp.lt.s32.totalorder %s21, 1
      %s264 = scalar_select %p263, %s21, 1
      %p265 = scmp.lt.s32.totalorder %s262, 2
      %s266 = scalar_select %p265, %s262, 2
      %p267 = scmp.lt.s32.totalorder %s19, 0
      %s268 = scalar_select %p267, %s19, 0
      %s269 = sadd.s32 %s268, %s266
      %s270 = smul.addr %s264, 3
      %s271 = sadd.s32 %s269, %s270
      %s272 = smul.addr %s271, 8
      %s273 = scalar_lea.vmem %s3, %s272
      %s274 = smul.u32 3, %s20
      %v275 = vld [vmem:[%s247] sm:$0xff]
      %v276 = vld [vmem:[%s247 + $0x8] sm:$0xff]
      %v277 = vld [vmem:[%s247 + $0x10] sm:$0x1f]
      %v278 = vld [vmem:[%s252] sm:$0xff]
      %v279 = vld [vmem:[%s252 + $0x8] sm:$0xff]
      %v280 = vld [vmem:[%s252 + $0x10] sm:$0xff]
      %v281 = vld [vmem:[%s252 + $0x18] sm:$0xff]
      %v282 = vld [vmem:[%s252 + $0x20] sm:$0xff]
      %v283 = vld [vmem:[%s252 + $0x28] sm:$0xff]
      %v284 = vld [vmem:[%s252 + $0x30] sm:$0xff]
      %v285 = vld [vmem:[%s252 + $0x38] sm:$0xff]
      %v286 = vld [vmem:[%s260] sm:$0xff]
      %v287 = vld [vmem:[%s260 + $0x8] sm:$0xff]
      %v288 = vld [vmem:[%s260 + $0x10] sm:$0x1f]
      %vm289 = vcmask 523264
      %v291 = vsel %vm289, %v275, 0
      %v294 = vsel %vm289, %v276, 0
      %v297 = vsel %vm289, %v277, 0
      %299 = vmatprep.subr.mxu0 0.0
      %300 = vmatpush1.msra.mxu0 0.0
      %301 = vmatprep.subr.mxu0 0.0
      %302 = vmatpush1.msra.mxu0 0.0
      %303 = vmatprep.subr.mxu0 0.0
      %304 = vmatpush1.msra.mxu0 0.0
      %305 = vmatprep.subr.mxu0 0.0
      %306 = vmatpush1.msra.mxu0 0.0
      %307 = vmatprep.subr.mxu0 0.0
      %308 = vmatpush1.msra.mxu0 0.0
      %309 = vmatprep.subr.mxu0 0.0
      %310 = vmatpush1.msra.mxu0 0.0
      %311 = vmatprep.subr.mxu0 0.0
      %312 = vmatpush1.msra.mxu0 0.0
      %313 = vmatprep.subr.mxu0 0.0
      %314 = vmatpush1.msra.mxu0 0.0
      %315 = vmatprep.subr.mxu0 0.0
      %316 = vmatpush1.msra.mxu0 %v285
      %317 = vmatprep.subr.mxu0 0.0
      %318 = vmatpush1.msra.mxu0 %v284
      %319 = vmatprep.subr.mxu0 0.0
      %320 = vmatpush1.msra.mxu0 %v283
      %321 = vmatprep.subr.mxu0 0.0
      %322 = vmatpush1.msra.mxu0 %v282
      %323 = vmatprep.subr.mxu0 0.0
      %324 = vmatpush1.msra.mxu0 %v281
      %325 = vmatprep.subr.mxu0 0.0
      %326 = vmatpush1.msra.mxu0 %v280
      %327 = vmatprep.subr.mxu0 0.0
      %328 = vmatpush1.msra.mxu0 %v279
      %329 = vmatprep.subr.mxu0 0.0
      %330 = vmatpush1.msra.mxu0 %v278
      %331 = vmatprep.subr.mxu0 0.0
      %332 = vmatpush2.msra.mxu0 0.0
      %333 = vmatprep.subr.mxu0 0.0
      %334 = vmatpush2.msra.mxu0 0.0
      %335 = vmatprep.subr.mxu0 0.0
      %336 = vmatpush2.msra.mxu0 0.0
      %337 = vmatprep.subr.mxu0 0.0
      %338 = vmatpush2.msra.mxu0 0.0
      %339 = vmatprep.subr.mxu0 0.0
      %340 = vmatpush2.msra.mxu0 0.0
      %341 = vmatprep.subr.mxu0 0.0
      %342 = vmatpush2.msra.mxu0 0.0
      %343 = vmatprep.subr.mxu0 0.0
      %344 = vmatpush2.msra.mxu0 0.0
      %345 = vmatprep.subr.mxu0 0.0
      %346 = vmatpush2.msra.mxu0 0.0
      %347 = vmatprep.subr.mxu0 0.0
      %348 = vmatpush2.msra.mxu0 0.0
      %349 = vmatprep.subr.mxu0 0.0
      %350 = vmatpush2.msra.mxu0 0.0
      %351 = vmatprep.subr.mxu0 0.0
      %352 = vmatpush2.msra.mxu0 0.0
      %353 = vmatprep.subr.mxu0 0.0
      %354 = vmatpush2.msra.mxu0 0.0
      %355 = vmatprep.subr.mxu0 0.0
      %356 = vmatpush2.msra.mxu0 0.0
      %357 = vmatprep.subr.mxu0 0.0
      %358 = vmatpush2.msra.mxu0 0.0
      %359 = vmatprep.subr.mxu0 0.0
      %360 = vmatpush2.msra.mxu0 0.0
      %361 = vmatprep.subr.mxu0 0.0
      %362 = vmatpush2.msra.mxu0 0.0
      %363 = vmatprep.mubr.f32.mxu0 0.0
      %364 = vmatmul.mubr.f32.gmra.mxu0 %v291
      %v365 = vpop.f32.mrf.mxu0
      %v366 = vadd.f32 %v286, %v365
      %v367 = vpop.f32.mrf.mxu0
      %368 = vmatprep.mubr.f32.mxu0 0.0
      %369 = vmatmul.mubr.f32.gmra.mxu0 %v294
      %v370 = vpop.f32.mrf.mxu0
      %v371 = vadd.f32 %v287, %v370
      %v372 = vpop.f32.mrf.mxu0
      %373 = vmatprep.mubr.f32.mxu0 0.0
      %374 = vmatmul.mubr.f32.gmra.mxu0 %v297
      %v375 = vpop.f32.mrf.mxu0
      %v376 = vadd.f32 %v288, %v375
      %v377 = vpop.f32.mrf.mxu0
      %378 = vdwg.mxu0
      %vm379 = vcmask 261120
      %380 = vst.msk [vmem:[%s273] sm:$0xff] %vm379, %v366
      %381 = vst.msk [vmem:[%s273 + $0x8] sm:$0xff] %vm379, %v371
      %vm382 = vcmask 258048
      %383 = vst.msk [vmem:[%s273 + $0x10] sm:$0x1f] %vm382, %v376
      %s384 = smul.u32 3, %s20
      %p385 = scmp.lt.s32.totalorder %s21, 1
      %s386 = scalar_select %p385, %s21, 1
      %p387 = scmp.lt.s32.totalorder %s384, 2
      %s388 = scalar_select %p387, %s384, 2
      %p389 = scmp.lt.s32.totalorder %s19, 0
      %s390 = scalar_select %p389, %s19, 0
      %s391 = sadd.s32 %s390, %s388
      %s392 = smul.addr %s386, 3
      %s393 = sadd.s32 %s391, %s392
      %s394 = smul.addr %s393, 8
      %s395 = scalar_lea.vmem %s3, %s394
      // Predicated region
      $region33: #{eomt_embeddings_forward.1} parent=31 // pred_check
        %p396 = pneg %p137
      $region34: #{eomt_embeddings_forward.1} parent=31 // pred_check_branch
        %398 = sbr.rel (%p396) target = $region36
      $region35: #{eomt_embeddings_forward.1} parent=31 // pred_region
        %s399 = smul.u32 3, %s20
      $region36: #{eomt_embeddings_forward.1} parent=31 // pred_fallthru
        _
    $region32: #{eomt_embeddings_forward.1} parent=5 // pred_fallthru
      _
    %p400 = scmp.le.s32.totalorder 2, %s9
    // Predicated region
    $region37: #{eomt_embeddings_forward.1} parent=5 // pred_check
      %p401 = pneg %p400
    $region38: #{eomt_embeddings_forward.1} parent=5 // pred_check_branch
      %403 = sbr.rel (%p401) target = $region40
    $region39: #{eomt_embeddings_forward.1} parent=5 // pred_region
      %s404 = ssub.s32 %s9, 2
      // Predicated region
      $region41: #{eomt_embeddings_forward.1} parent=39 // pred_check
        %p405 = pneg %p143
      $region42: #{eomt_embeddings_forward.1} parent=39 // pred_check_branch
        %407 = sbr.rel (%p405) target = $region44
      $region43: #{eomt_embeddings_forward.1} parent=39 // pred_region
        %s408 = smul.u32 3, %s23
        %p409 = scmp.lt.s32.totalorder %s24, 1
        %s410 = scalar_select %p409, %s24, 1
        %p411 = scmp.lt.s32.totalorder %s408, 2
        %s412 = scalar_select %p411, %s408, 2
        %p413 = scmp.lt.s32.totalorder %s22, 0
        %s414 = scalar_select %p413, %s22, 0
        %s415 = sadd.s32 %s414, %s412
        %s416 = smul.addr %s410, 3
        %s417 = sadd.s32 %s415, %s416
        %s418 = smul.addr %s417, 8
        %s419 = scalar_lea.vmem %s3, %s418
      $region44: #{eomt_embeddings_forward.1} parent=39 // pred_fallthru
        _
    $region40: #{eomt_embeddings_forward.1} parent=5 // pred_fallthru
      _
  $region6: #{eomt_embeddings_forward.1} parent=0 // loop_footer
    %s13 = sadd.s32 1, %s9
  $region7: #{eomt_embeddings_forward.1} parent=0 // loop_footer_branch
    %8 = sbr.rel target = $region3
  $region8: #{eomt_embeddings_forward.1} parent=0 // loop_exit
    _

</llo_original>
